<compile_context>
chip_gen: v6e
topology: v6e:2x2x1
jax: 0.10.0
libtpu: 0.0.40
codegen_flags: <defaults>
</compile_context>

<pallas_src>
import jax
import jax.numpy as jnp
from jax.experimental import pallas as pl
from jax.experimental.pallas import tpu as pltpu

_LANE = 128


# ------------------------------- helpers ------------------------------------

def _round_up(x: int, m: int) -> int:
    return ((x + m - 1) // m) * m


def _pick_tile(dim: int, candidates) -> int:
    """Largest candidate that divides `dim` (dims are padded to 128-multiples)."""
    for c in candidates:
        if c <= dim and dim % c == 0:
            return c
    return dim


# ----------------------------- Pallas kernels -------------------------------

def _hop_kernel(a_ref, x_ref, sum_ref, newx_ref, newsum_ref, acc_ref):
    """Tiled A @ X with fused MixSG hop epilogue.

    acc accumulates over the K grid axis; on the last K step:
        new_x  = acc - sum_x
        sum_x' = sum_x + new_x
    Both outputs are emitted from the same call (VPU filler under MXU loop).
    """
    k = pl.program_id(2)

    @pl.when(k == 0)
    def _():
        acc_ref[...] = jnp.zeros_like(acc_ref)

    acc_ref[...] += jnp.dot(a_ref[...], x_ref[...],
                            preferred_element_type=jnp.float32)

    @pl.when(k == pl.num_programs(2) - 1)
    def _():
        new_x = acc_ref[...] - sum_ref[...]
        newx_ref[...] = new_x
        newsum_ref[...] = sum_ref[...] + new_x


def _linear_kernel(x_ref, w_ref, b_ref, o_ref, acc_ref):
    """Tiled x @ w_t + b with f32 accumulator and bias added at finalize."""
    k = pl.program_id(2)

    @pl.when(k == 0)
    def _():
        acc_ref[...] = jnp.zeros_like(acc_ref)

    acc_ref[...] += jnp.dot(x_ref[...], w_ref[...],
                            preferred_element_type=jnp.float32)

    @pl.when(k == pl.num_programs(2) - 1)
    def _():
        o_ref[...] = (acc_ref[...] + b_ref[...]).astype(o_ref.dtype)


# ------------------------------ kernel wrappers ------------------------------

def pallas_hop(a_bf16: jax.Array, x_bf16: jax.Array,
               sum_x: jax.Array):
    """One MixSG hop: (new_x, new_sum_x) = fused(A @ x, sum_x).  All padded."""
    M, K = a_bf16.shape
    K2, F = x_bf16.shape
    assert K == K2 and sum_x.shape == (M, F)
    tm = _pick_tile(M, (256, 128))
    tn = _pick_tile(F, (256, 128))
    tk = _pick_tile(K, (512, 256, 128))
    grid = (M // tm, F // tn, K // tk)

    return pl.pallas_call(
        _hop_kernel,
        out_shape=(jax.ShapeDtypeStruct((M, F), jnp.float32),
                   jax.ShapeDtypeStruct((M, F), jnp.float32)),
        grid_spec=pltpu.PrefetchScalarGridSpec(
            num_scalar_prefetch=0,
            grid=grid,
            in_specs=[
                pl.BlockSpec((tm, tk), lambda i, j, k: (i, k)),   # A tile
                pl.BlockSpec((tk, tn), lambda i, j, k: (k, j)),   # X tile
                pl.BlockSpec((tm, tn), lambda i, j, k: (i, j)),   # sum_x tile
            ],
            out_specs=[
                pl.BlockSpec((tm, tn), lambda i, j, k: (i, j)),   # new_x
                pl.BlockSpec((tm, tn), lambda i, j, k: (i, j)),   # new sum_x
            ],
            scratch_shapes=[pltpu.VMEM((tm, tn), jnp.float32)],
        ),
        compiler_params=pltpu.CompilerParams(
            dimension_semantics=("parallel", "parallel", "arbitrary")),
        cost_estimate=pl.CostEstimate(
            flops=2 * M * K * F,
            transcendentals=0,
            bytes_accessed=M * K * 2 + K * F * 2 + 3 * M * F * 4),
    )(a_bf16, x_bf16, sum_x)


def pallas_linear(x_bf16: jax.Array, w_t_bf16: jax.Array,
                  b2d: jax.Array) -> jax.Array:
    """y = x[N,K] @ w_t[K,M] + b[1,M] -- K-tiled, lane-dense output."""
    M, K = x_bf16.shape
    K2, N = w_t_bf16.shape
    assert K == K2 and b2d.shape == (1, N)
    tm = _pick_tile(M, (256, 128))
    tn = _pick_tile(N, (256, 128))
    tk = _pick_tile(K, (512, 256, 128))
    grid = (M // tm, N // tn, K // tk)

    return pl.pallas_call(
        _linear_kernel,
        out_shape=jax.ShapeDtypeStruct((M, N), jnp.float32),
        grid_spec=pltpu.PrefetchScalarGridSpec(
            num_scalar_prefetch=0,
            grid=grid,
            in_specs=[
                pl.BlockSpec((tm, tk), lambda i, j, k: (i, k)),   # x tile
                pl.BlockSpec((tk, tn), lambda i, j, k: (k, j)),   # w_t tile
                pl.BlockSpec((1, tn), lambda i, j, k: (0, j)),    # bias tile
            ],
            out_specs=pl.BlockSpec((tm, tn), lambda i, j, k: (i, j)),
            scratch_shapes=[pltpu.VMEM((tm, tn), jnp.float32)],
        ),
        compiler_params=pltpu.CompilerParams(
            dimension_semantics=("parallel", "parallel", "arbitrary")),
        cost_estimate=pl.CostEstimate(
            flops=2 * M * K * N,
            transcendentals=0,
            bytes_accessed=M * K * 2 + K * N * 2 + N * 4 + M * N * 4),
    )(x_bf16, w_t_bf16, b2d)


# ------------------------------- MixSG glue ---------------------------------

def mean_adjacency(edge_index: jax.Array, num_nodes: int) -> jax.Array:
    """Dense normalized adjacency replicating SimpleConv(aggr='mean',
    combine_root=None): out[t] = mean over incoming edges (s -> t) of x[s];
    isolated nodes get zeros (matches scatter-mean semantics)."""
    # TODO(synk): for large sparse graphs, replace dense A_norm @ X with a
    # PrefetchScalarGridSpec gather/segment-mean kernel (CSR offsets in SMEM).
    src, dst = edge_index[0], edge_index[1]
    counts = jnp.zeros((num_nodes, num_nodes), jnp.float32)
    counts = counts.at[dst, src].add(1.0)            # multi-edges accumulate
    deg = counts.sum(axis=1, keepdims=True)          # in-degree per target
    return counts / jnp.maximum(deg, 1.0)


def mixsg_precompute(x: jax.Array, edge_index: jax.Array, hops: int):
    """Replicates MixSG.__init__ feature construction (padded/aligned)."""
    num_nodes, feat = x.shape
    n_pad = _round_up(num_nodes, _LANE)
    f_pad = _round_up(feat, _LANE)

    a_norm = mean_adjacency(edge_index, num_nodes)
    a_pad = jnp.zeros((n_pad, n_pad), jnp.float32)
    a_pad = a_pad.at[:num_nodes, :num_nodes].set(a_norm)
    a_bf16 = a_pad.astype(jnp.bfloat16)              # bf16 A reused every hop

    x_pad = jnp.zeros((n_pad, f_pad), jnp.float32).at[:num_nodes, :feat].set(x)

    x_lst = [x_pad]
    sum_x = jnp.zeros_like(x_pad)
    x_cur_bf16 = x_pad.astype(jnp.bfloat16)
    for _ in range(hops):
        new_x, sum_x = pallas_hop(a_bf16, x_cur_bf16, sum_x)  # fused epilogue
        x_lst.append(new_x)
        x_cur_bf16 = new_x.astype(jnp.bfloat16)

    x_cat_pad = jnp.concatenate(x_lst, axis=1)       # [n_pad, (hops+1)*f_pad]
    return x_cat_pad, n_pad, f_pad


def prepare_linear_params(w: jax.Array, b: jax.Array, feat: int, f_pad: int,
                          hops: int, out_channels: int):
    """Transpose + zero-pad the PyTorch-style Linear params ONCE (init-time),
    laid out per-hop block so padded feature columns hit zero weight rows."""
    out_pad = _round_up(out_channels, _LANE)
    k_pad = (hops + 1) * f_pad
    w_t = jnp.zeros((k_pad, out_pad), jnp.float32)
    for h in range(hops + 1):
        w_h = w[:, h * feat:(h + 1) * feat]          # [out, feat]
        w_t = w_t.at[h * f_pad:h * f_pad + feat, :out_channels].set(w_h.T)
    b_pad = jnp.zeros((1, out_pad), jnp.float32).at[0, :out_channels].set(b)
    return w_t.astype(jnp.bfloat16), b_pad


def mixsg_forward(x_cat_bf16: jax.Array, w_t_bf16: jax.Array, b_pad: jax.Array,
                  num_nodes: int, out_channels: int) -> jax.Array:
    """forward(): single tiled lane-dense linear; slice padding off."""
    y_pad = pallas_linear(x_cat_bf16, w_t_bf16, b_pad)
    return y_pad[:num_nodes, :out_channels]


# ---------------------------------- main -------------------------------------

if __name__ == "__main__":
    # Small deterministic problem.
    num_nodes = 8
    in_features = 16
    hops = 2
    out_channels = 8
    num_edges = 16

    key = jax.random.PRNGKey(0)
    k_x, k_src, k_dst, k_w, k_b = jax.random.split(key, 5)

    x = jax.random.normal(k_x, (num_nodes, in_features), jnp.float32)
    edge_index = jnp.stack([
        jax.random.randint(k_src, (num_edges,), 0, num_nodes),
        jax.random.randint(k_dst, (num_edges,), 0, num_nodes),
    ]).astype(jnp.int32)                              # [2, E]

    # Deterministic Linear params (PyTorch-style shapes: W[out, in], b[out]).
    fan_in = in_features * (hops + 1)
    bound = 1.0 / jnp.sqrt(jnp.float32(fan_in))
    w = jax.random.uniform(k_w, (out_channels, fan_in), jnp.float32,
                           minval=-bound, maxval=bound)
    b = jax.random.uniform(k_b, (out_channels,), jnp.float32,
                           minval=-bound, maxval=bound)

    # __init__-time precompute: fused hop kernels (bf16 MXU, f32 accum).
    x_cat_pad, n_pad, f_pad = mixsg_precompute(x, edge_index, hops)
    x_cat_bf16 = x_cat_pad.astype(jnp.bfloat16)       # cached, like self.x

    # Parameter init: transpose + pad W once (hoisted out of forward).
    w_t_bf16, b_pad = prepare_linear_params(w, b, in_features, f_pad,
                                            hops, out_channels)

    # forward() — the Pallas tiled linear (hot path).
    y = mixsg_forward(x_cat_bf16, w_t_bf16, b_pad, num_nodes, out_channels)
    y = jax.block_until_ready(y)

    # ----------------------------- references --------------------------------
    a_f32 = mean_adjacency(edge_index, num_nodes)

    # (1) Exact-pipeline reference: same bf16-input / f32-accum math in XLA.
    a_bf = a_f32.astype(jnp.bfloat16)
    x_lst = [x]
    sum_x = jnp.zeros_like(x)
    for _ in range(hops):
        agg = jnp.dot(a_bf, x_lst[-1].astype(jnp.bfloat16),
                      preferred_element_type=jnp.float32)
        new_x = agg - sum_x
        sum_x = sum_x + new_x
        x_lst.append(new_x)
    x_cat_ref = jnp.concatenate(x_lst, axis=1)
    y_ref_bf = jnp.dot(x_cat_ref.astype(jnp.bfloat16),
                       jnp.transpose(w).astype(jnp.bfloat16),
                       preferred_element_type=jnp.float32) + b

    # (2) Pure-f32 MixSG semantics (loose check: bf16 rounding allowed).
    x_lst32 = [x]
    sum32 = jnp.zeros_like(x)
    for _ in range(hops):
        new32 = a_f32 @ x_lst32[-1] - sum32
        sum32 = sum32 + new32
        x_lst32.append(new32)
    y_ref_f32 = jnp.concatenate(x_lst32, axis=1) @ w.T + b

    assert y.shape == (num_nodes, out_channels)
    assert jnp.allclose(y, y_ref_bf, atol=1e-3, rtol=1e-3), \
        float(jnp.max(jnp.abs(y - y_ref_bf)))
    assert jnp.allclose(y, y_ref_f32, atol=5e-2, rtol=5e-2), \
        float(jnp.max(jnp.abs(y - y_ref_f32)))

    print("KERNEL_OK")
</pallas_src>

<mosaic_0001>
module attributes {stable_mosaic.version = 11 : i64} {
  func.func @_hop_kernel(%arg0: i32, %arg1: i32, %arg2: i32, %arg3: memref<128x128xbf16, #tpu.memory_space<vmem>>, %arg4: memref<128x128xbf16, #tpu.memory_space<vmem>>, %arg5: memref<128x128xf32, #tpu.memory_space<vmem>>, %arg6: memref<128x128xf32, #tpu.memory_space<vmem>>, %arg7: memref<128x128xf32, #tpu.memory_space<vmem>>, %arg8: memref<128x128xf32, #tpu.memory_space<vmem>>) attributes {dimension_semantics = [#tpu.dimension_semantics<parallel>, #tpu.dimension_semantics<parallel>, #tpu.dimension_semantics<arbitrary>], iteration_bounds = array<i64: 1, 1, 1>, scalar_prefetch = 0 : i64, scratch_operands = 1 : i64, tpu.core_type = #tpu.core_type<tc>, window_params = [{transform_indices = @transform_0, window_bounds = array<i64: 128, 128>}, {transform_indices = @transform_1, window_bounds = array<i64: 128, 128>}, {transform_indices = @transform_2, window_bounds = array<i64: 128, 128>}, {transform_indices = @transform_3, window_bounds = array<i64: 128, 128>}, {transform_indices = @transform_4, window_bounds = array<i64: 128, 128>}]} {
    %c0_i32 = arith.constant 0 : i32
    %0 = arith.cmpi eq, %arg2, %c0_i32 : i32
    %1 = arith.extui %0 : i1 to i32
    %c0_i32_0 = arith.constant 0 : i32
    %2 = arith.cmpi ne, %1, %c0_i32_0 : i32
    scf.if %2 {
      %cst_10 = arith.constant 0.000000e+00 : f32
      %12 = vector.broadcast %cst_10 : f32 to vector<128x128xf32>
      %c0_11 = arith.constant 0 : index
      %c0_12 = arith.constant 0 : index
      %13 = vector.load %arg8[%c0_11, %c0_12] : memref<128x128xf32, #tpu.memory_space<vmem>>, vector<128x128xf32>
      tpu.vector_store %arg8[%c0_11, %c0_12], %12 {strides = array<i32>} : memref<128x128xf32, #tpu.memory_space<vmem>>, vector<128x128xf32>,
    } else {
    }
    %c0 = arith.constant 0 : index
    %c0_1 = arith.constant 0 : index
    %3 = vector.load %arg8[%c0, %c0_1] : memref<128x128xf32, #tpu.memory_space<vmem>>, vector<128x128xf32>
    %c0_2 = arith.constant 0 : index
    %c0_3 = arith.constant 0 : index
    %4 = vector.load %arg3[%c0_2, %c0_3] : memref<128x128xbf16, #tpu.memory_space<vmem>>, vector<128x128xbf16>
    %c0_4 = arith.constant 0 : index
    %c0_5 = arith.constant 0 : index
    %5 = vector.load %arg4[%c0_4, %c0_5] : memref<128x128xbf16, #tpu.memory_space<vmem>>, vector<128x128xbf16>
    %cst = arith.constant dense<0.000000e+00> : vector<128x128xf32>
    %6 = tpu.matmul %4, %5, %cst {dimension_numbers = #tpu.dot_dimension_numbers<[1], [0], [0], [1], [0, 0, 1, 1], [], []>} : vector<128x128xbf16>, vector<128x128xbf16>, vector<128x128xf32> -> vector<128x128xf32>
    %7 = arith.addf %3, %6 : vector<128x128xf32>
    %c0_6 = arith.constant 0 : index
    %c0_7 = arith.constant 0 : index
    %8 = vector.load %arg8[%c0_6, %c0_7] : memref<128x128xf32, #tpu.memory_space<vmem>>, vector<128x128xf32>
    tpu.vector_store %arg8[%c0_6, %c0_7], %7 {strides = array<i32>} : memref<128x128xf32, #tpu.memory_space<vmem>>, vector<128x128xf32>,
    %c0_i32_8 = arith.constant 0 : i32
    %9 = arith.cmpi eq, %arg2, %c0_i32_8 : i32
    %10 = arith.extui %9 : i1 to i32
    %c0_i32_9 = arith.constant 0 : i32
    %11 = arith.cmpi ne, %10, %c0_i32_9 : i32
    scf.if %11 {
      %c0_10 = arith.constant 0 : index
      %c0_11 = arith.constant 0 : index
      %12 = vector.load %arg8[%c0_10, %c0_11] : memref<128x128xf32, #tpu.memory_space<vmem>>, vector<128x128xf32>
      %c0_12 = arith.constant 0 : index
      %c0_13 = arith.constant 0 : index
      %13 = vector.load %arg5[%c0_12, %c0_13] : memref<128x128xf32, #tpu.memory_space<vmem>>, vector<128x128xf32>
      %14 = arith.subf %12, %13 : vector<128x128xf32>
      %c0_14 = arith.constant 0 : index
      %c0_15 = arith.constant 0 : index
      %15 = vector.load %arg6[%c0_14, %c0_15] : memref<128x128xf32, #tpu.memory_space<vmem>>, vector<128x128xf32>
      tpu.vector_store %arg6[%c0_14, %c0_15], %14 {strides = array<i32>} : memref<128x128xf32, #tpu.memory_space<vmem>>, vector<128x128xf32>,
      %c0_16 = arith.constant 0 : index
      %c0_17 = arith.constant 0 : index
      %16 = vector.load %arg5[%c0_16, %c0_17] : memref<128x128xf32, #tpu.memory_space<vmem>>, vector<128x128xf32>
      %17 = arith.addf %16, %14 : vector<128x128xf32>
      %c0_18 = arith.constant 0 : index
      %c0_19 = arith.constant 0 : index
      %18 = vector.load %arg7[%c0_18, %c0_19] : memref<128x128xf32, #tpu.memory_space<vmem>>, vector<128x128xf32>
      tpu.vector_store %arg7[%c0_18, %c0_19], %17 {strides = array<i32>} : memref<128x128xf32, #tpu.memory_space<vmem>>, vector<128x128xf32>,
    } else {
    }
    return
  }
  func.func @transform_0(%arg0: i32, %arg1: i32, %arg2: i32) -> (i32, i32) {
    %c0_i32 = arith.constant 0 : i32
    return %arg0, %arg2 : i32, i32
  }
  func.func @transform_1(%arg0: i32, %arg1: i32, %arg2: i32) -> (i32, i32) {
    %c0_i32 = arith.constant 0 : i32
    return %arg2, %arg1 : i32, i32
  }
  func.func @transform_2(%arg0: i32, %arg1: i32, %arg2: i32) -> (i32, i32) {
    %c0_i32 = arith.constant 0 : i32
    return %arg0, %arg1 : i32, i32
  }
  func.func @transform_3(%arg0: i32, %arg1: i32, %arg2: i32) -> (i32, i32) {
    %c0_i32 = arith.constant 0 : i32
    return %arg0, %arg1 : i32, i32
  }
  func.func @transform_4(%arg0: i32, %arg1: i32, %arg2: i32) -> (i32, i32) {
    %c0_i32 = arith.constant 0 : i32
    return %arg0, %arg1 : i32, i32
  }
}

</mosaic_0001>

<llo_original>
// kernel: tpu_custom_call.1
$region0: #{tpu_custom_call.1}
  #allocation0 [shape = 'u32[]', space=smem, size = 0x4, offset = 0x4, fixed_abs, tag = 'smem constant byte address 0x4 - core index']
  #allocation1 [shape = 'u32[144,128]{1,0:T(1,128)}', space=vmem, size = 0x12000, scoped, tag = 'internal scratch']
  #allocation2 [shape = 'f32[128,128]{1,0:T(8,128)}', space=vmem, size = 0x10000, scoped, tag = 'scratch operand']
  %s0 = inlined_call_operand.hbm [shape: bf16[128,128], index: 0, kind: input, shape index: {}]
  %s1 = inlined_call_operand.hbm [shape: bf16[128,128], index: 1, kind: input, shape index: {}]
  %s2 = inlined_call_operand.hbm [shape: f32[128,128], index: 2, kind: input, shape index: {}]
  %s3 = inlined_call_operand.hbm [shape: f32[128,128], index: 3, kind: output, shape index: {0}]
  %s4 = inlined_call_operand.hbm [shape: f32[128,128], index: 4, kind: output, shape index: {1}]
  %5 = xla_tuple %s3, %s4
  %s6 = sld [smem:[#allocation0]]
  $region50: #{tpu_custom_call.1} parent=0
    _
  %s8 = ssub.s32 1, %s6
  %s9 = scalar_select 0, %s8, %s6
  $region1: #{tpu_custom_call.1} parent=0
    #allocation3 [shape = 'u8[32768]{0}', space=vmem, size = 0x8000, scoped, tag = 'input window, operand 0, single buffered']
    #allocation4 [shape = 's32[1]{0}', space=sflag, size = 0x4, scoped, tag = 'scoped memory for tpu_custom_call.1']
    #allocation5 [shape = 's32[1]{0}', space=sflag, size = 0x4, scoped, tag = 'scoped memory for tpu_custom_call.1']
    #allocation6 [shape = 'u8[32768]{0}', space=vmem, size = 0x8000, scoped, tag = 'input window, operand 1, single buffered']
    #allocation7 [shape = 's32[1]{0}', space=sflag, size = 0x4, scoped, tag = 'scoped memory for tpu_custom_call.1']
    #allocation8 [shape = 'u8[65536]{0}', space=vmem, size = 0x10000, scoped, tag = 'input window, operand 2, single buffered']
    #allocation9 [shape = 'u8[65536]{0}', space=vmem, size = 0x10000, scoped, tag = 'output window, operand 0, single buffered']
    #allocation10 [shape = 'u8[65536]{0}', space=vmem, size = 0x10000, scoped, tag = 'output window, operand 1, single buffered']
    #allocation11 [shape = 's32[1]{0}', space=sflag, size = 0x4, scoped, tag = 'scoped memory for tpu_custom_call.1']
    %10 = vsyncpa [#allocation4], 0
    %11 = vsyncpa [#allocation7], 0
    %12 = vsyncpa [#allocation5], 0
    %13 = vsyncpa [#allocation11], 0
    // Predicated region
    $region2: #{tpu_custom_call.1} parent=1 // pred_check
      _
    $region3: #{tpu_custom_call.1} parent=1 // pred_check_branch
      %15 = sbr.rel (0) target = $region5
    $region4: #{tpu_custom_call.1} parent=1 // pred_region
      %s17 = ssub.s32 1024, 1024
      %18 = vsyncadd [#allocation4], %s17
      %s19 = sshll.u32 [#allocation3], 4
      %s20 = int_to_ptr.vmem [resolvable:$true] %s19
      %25 = dma.hbm_to_vmem [thread:$0]  %s0, 1024, %s20, [#allocation4], 64, 64, 4
    $region5: #{tpu_custom_call.1} parent=1 // pred_fallthru
      _
    // Predicated region
    $region6: #{tpu_custom_call.1} parent=1 // pred_check
      _
    $region7: #{tpu_custom_call.1} parent=1 // pred_check_branch
      %27 = sbr.rel (0) target = $region9
    $region8: #{tpu_custom_call.1} parent=1 // pred_region
      %s29 = ssub.s32 1024, 1024
      %30 = vsyncadd [#allocation7], %s29
      %s31 = sshll.u32 [#allocation6], 4
      %s32 = int_to_ptr.vmem [resolvable:$true] %s31
      %37 = dma.hbm_to_vmem [thread:$0]  %s1, 1024, %s32, [#allocation7], 64, 64, 4
    $region9: #{tpu_custom_call.1} parent=1 // pred_fallthru
      _
    // Predicated region
    $region10: #{tpu_custom_call.1} parent=1 // pred_check
      _
    $region11: #{tpu_custom_call.1} parent=1 // pred_check_branch
      %39 = sbr.rel (0) target = $region13
    $region12: #{tpu_custom_call.1} parent=1 // pred_region
      %s41 = ssub.s32 2048, 2048
      %42 = vsyncadd [#allocation7], %s41
      %s43 = sshll.u32 [#allocation8], 4
      %s44 = int_to_ptr.vmem [resolvable:$true] %s43
      %49 = dma.hbm_to_vmem [thread:$0]  %s2, 2048, %s44, [#allocation7], 128, 128, 8
    $region13: #{tpu_custom_call.1} parent=1 // pred_fallthru
      _
    // Predicated region
    $region14: #{tpu_custom_call.1} parent=1 // pred_check
      _
    $region15: #{tpu_custom_call.1} parent=1 // pred_check_branch
      %51 = sbr.rel (0) target = $region17
    $region16: #{tpu_custom_call.1} parent=1 // pred_region
      %52 = dma.done [#allocation4], 1024
    $region17: #{tpu_custom_call.1} parent=1 // pred_fallthru
      _
    // Predicated region
    $region18: #{tpu_custom_call.1} parent=1 // pred_check
      _
    $region19: #{tpu_custom_call.1} parent=1 // pred_check_branch
      %54 = sbr.rel (0) target = $region21
    $region20: #{tpu_custom_call.1} parent=1 // pred_region
      %55 = dma.done [#allocation7], 1024
    $region21: #{tpu_custom_call.1} parent=1 // pred_fallthru
      _
    // Predicated region
    $region22: #{tpu_custom_call.1} parent=1 // pred_check
      _
    $region23: #{tpu_custom_call.1} parent=1 // pred_check_branch
      %57 = sbr.rel (0) target = $region25
    $region24: #{tpu_custom_call.1} parent=1 // pred_region
      %58 = dma.done [#allocation7], 2048
    $region25: #{tpu_custom_call.1} parent=1 // pred_fallthru
      _
    %p60 = scmp.eq.s32.totalorder 0, 0
    // Predicated region
    $region26: #{tpu_custom_call.1} parent=1 // pred_check
      %p61 = pneg %p60
    $region27: #{tpu_custom_call.1} parent=1 // pred_check_branch
      %63 = sbr.rel (%p61) target = $region29
    $region28: #{tpu_custom_call.1} parent=1 // pred_region
      %64 = vst [vmem:[#allocation2] sm:$0xff] 0.0
      %65 = vst [vmem:[#allocation2 + $0x8] sm:$0xff] 0.0
      %66 = vst [vmem:[#allocation2 + $0x10] sm:$0xff] 0.0
      %67 = vst [vmem:[#allocation2 + $0x18] sm:$0xff] 0.0
      %68 = vst [vmem:[#allocation2 + $0x20] sm:$0xff] 0.0
      %69 = vst [vmem:[#allocation2 + $0x28] sm:$0xff] 0.0
      %70 = vst [vmem:[#allocation2 + $0x30] sm:$0xff] 0.0
      %71 = vst [vmem:[#allocation2 + $0x38] sm:$0xff] 0.0
      %72 = vst [vmem:[#allocation2 + $0x40] sm:$0xff] 0.0
      %73 = vst [vmem:[#allocation2 + $0x48] sm:$0xff] 0.0
      %74 = vst [vmem:[#allocation2 + $0x50] sm:$0xff] 0.0
      %75 = vst [vmem:[#allocation2 + $0x58] sm:$0xff] 0.0
      %76 = vst [vmem:[#allocation2 + $0x60] sm:$0xff] 0.0
      %77 = vst [vmem:[#allocation2 + $0x68] sm:$0xff] 0.0
      %78 = vst [vmem:[#allocation2 + $0x70] sm:$0xff] 0.0
      %79 = vst [vmem:[#allocation2 + $0x78] sm:$0xff] 0.0
    $region29: #{tpu_custom_call.1} parent=1 // pred_fallthru
      _
    %v80 = vld [vmem:[#allocation2] sm:$0xff]
    %v81 = vld [vmem:[#allocation2 + $0x8] sm:$0xff]
    %v82 = vld [vmem:[#allocation2 + $0x10] sm:$0xff]
    %v83 = vld [vmem:[#allocation2 + $0x18] sm:$0xff]
    %v84 = vld [vmem:[#allocation2 + $0x20] sm:$0xff]
    %v85 = vld [vmem:[#allocation2 + $0x28] sm:$0xff]
    %v86 = vld [vmem:[#allocation2 + $0x30] sm:$0xff]
    %v87 = vld [vmem:[#allocation2 + $0x38] sm:$0xff]
    %v88 = vld [vmem:[#allocation2 + $0x40] sm:$0xff]
    %v89 = vld [vmem:[#allocation2 + $0x48] sm:$0xff]
    %v90 = vld [vmem:[#allocation2 + $0x50] sm:$0xff]
    %v91 = vld [vmem:[#allocation2 + $0x58] sm:$0xff]
    %v92 = vld [vmem:[#allocation2 + $0x60] sm:$0xff]
    %v93 = vld [vmem:[#allocation2 + $0x68] sm:$0xff]
    %v94 = vld [vmem:[#allocation2 + $0x70] sm:$0xff]
    %v95 = vld [vmem:[#allocation2 + $0x78] sm:$0xff]
    %v96 = vld [vmem:[#allocation3] sm:$0xf]
    %v97 = vld [vmem:[#allocation3 + $0x4] sm:$0xf]
    %v98 = vld [vmem:[#allocation3 + $0x8] sm:$0xf]
    %v99 = vld [vmem:[#allocation3 + $0xc] sm:$0xf]
    %v100 = vld [vmem:[#allocation3 + $0x10] sm:$0xf]
    %v101 = vld [vmem:[#allocation3 + $0x14] sm:$0xf]
    %v102 = vld [vmem:[#allocation3 + $0x18] sm:$0xf]
    %v103 = vld [vmem:[#allocation3 + $0x1c] sm:$0xf]
    %v104 = vld [vmem:[#allocation3 + $0x20] sm:$0xf]
    %v105 = vld [vmem:[#allocation3 + $0x24] sm:$0xf]
    %v106 = vld [vmem:[#allocation3 + $0x28] sm:$0xf]
    %v107 = vld [vmem:[#allocation3 + $0x2c] sm:$0xf]
    %v108 = vld [vmem:[#allocation3 + $0x30] sm:$0xf]
    %v109 = vld [vmem:[#allocation3 + $0x34] sm:$0xf]
    %v110 = vld [vmem:[#allocation3 + $0x38] sm:$0xf]
    %v111 = vld [vmem:[#allocation3 + $0x3c] sm:$0xf]
    %v112 = vld [vmem:[#allocation6] sm:$0xf]
    %v113 = vld [vmem:[#allocation6 + $0x4] sm:$0xf]
    %v114 = vld [vmem:[#allocation6 + $0x8] sm:$0xf]
    %v115 = vld [vmem:[#allocation6 + $0xc] sm:$0xf]
    %v116 = vld [vmem:[#allocation6 + $0x10] sm:$0xf]
    %v117 = vld [vmem:[#allocation6 + $0x14] sm:$0xf]
    %v118 = vld [vmem:[#allocation6 + $0x18] sm:$0xf]
    %v119 = vld [vmem:[#allocation6 + $0x1c] sm:$0xf]
    %v120 = vld [vmem:[#allocation6 + $0x20] sm:$0xf]
    %v121 = vld [vmem:[#allocation6 + $0x24] sm:$0xf]
    %v122 = vld [vmem:[#allocation6 + $0x28] sm:$0xf]
    %v123 = vld [vmem:[#allocation6 + $0x2c] sm:$0xf]
    %v124 = vld [vmem:[#allocation6 + $0x30] sm:$0xf]
    %v125 = vld [vmem:[#allocation6 + $0x34] sm:$0xf]
    %v126 = vld [vmem:[#allocation6 + $0x38] sm:$0xf]
    %v127 = vld [vmem:[#allocation6 + $0x3c] sm:$0xf]
    %v144 = vunpack.c.l.b16 %v96
    %v145 = vunpack.c.l.b16 %v97
    %v146 = vunpack.c.l.b16 %v98
    %v147 = vunpack.c.l.b16 %v99
    %v148 = vunpack.c.l.b16 %v100
    %v149 = vunpack.c.l.b16 %v101
    %v150 = vunpack.c.l.b16 %v102
    %v151 = vunpack.c.l.b16 %v103
    %v152 = vunpack.c.l.b16 %v104
    %v153 = vunpack.c.l.b16 %v105
    %v154 = vunpack.c.l.b16 %v106
    %v155 = vunpack.c.l.b16 %v107
    %v156 = vunpack.c.l.b16 %v108
    %v157 = vunpack.c.l.b16 %v109
    %v158 = vunpack.c.l.b16 %v110
    %v159 = vunpack.c.l.b16 %v111
    %v160 = vpack.c.b16 %v145, %v144
    %v161 = vpack.c.b16 %v147, %v146
    %v162 = vpack.c.b16 %v149, %v148
    %v163 = vpack.c.b16 %v151, %v150
    %v164 = vpack.c.b16 %v153, %v152
    %v165 = vpack.c.b16 %v155, %v154
    %v166 = vpack.c.b16 %v157, %v156
    %v167 = vpack.c.b16 %v159, %v158
    %v192 = vunpack.c.l.b16 %v112
    %v193 = vunpack.c.l.b16 %v113
    %v194 = vunpack.c.l.b16 %v114
    %v195 = vunpack.c.l.b16 %v115
    %v196 = vunpack.c.l.b16 %v116
    %v197 = vunpack.c.l.b16 %v117
    %v198 = vunpack.c.l.b16 %v118
    %v199 = vunpack.c.l.b16 %v119
    %v200 = vunpack.c.l.b16 %v120
    %v201 = vunpack.c.l.b16 %v121
    %v202 = vunpack.c.l.b16 %v122
    %v203 = vunpack.c.l.b16 %v123
    %v204 = vunpack.c.l.b16 %v124
    %v205 = vunpack.c.l.b16 %v125
    %v206 = vunpack.c.l.b16 %v126
    %v207 = vunpack.c.l.b16 %v127
    %v208 = vpack.c.b16 %v193, %v192
    %v209 = vpack.c.b16 %v195, %v194
    %v210 = vpack.c.b16 %v197, %v196
    %v211 = vpack.c.b16 %v199, %v198
    %v212 = vpack.c.b16 %v201, %v200
    %v213 = vpack.c.b16 %v203, %v202
    %v214 = vpack.c.b16 %v205, %v204
    %v215 = vpack.c.b16 %v207, %v206
    %224 = vmatprep.subr.bf16.mxu0 0
    %225 = vmatpush1.bf16.msra.mxu0 %v215
    %226 = vmatprep.subr.bf16.mxu0 0
    %227 = vmatpush1.bf16.msra.mxu0 %v214
    %228 = vmatprep.subr.bf16.mxu0 0
    %229 = vmatpush1.bf16.msra.mxu0 %v213
    %230 = vmatprep.subr.bf16.mxu0 0
    %231 = vmatpush1.bf16.msra.mxu0 %v212
    %232 = vmatprep.subr.bf16.mxu0 0
    %233 = vmatpush1.bf16.msra.mxu0 %v211
    %234 = vmatprep.subr.bf16.mxu0 0
    %235 = vmatpush1.bf16.msra.mxu0 %v210
    %236 = vmatprep.subr.bf16.mxu0 0
    %237 = vmatpush1.bf16.msra.mxu0 %v209
    %238 = vmatprep.subr.bf16.mxu0 0
    %239 = vmatpush1.bf16.msra.mxu0 %v208
    %240 = vmatprep.subr.bf16.mxu0 0
    %241 = vmatpush2.bf16.msra.mxu0 0
    %242 = vmatprep.subr.bf16.mxu0 0
    %243 = vmatpush2.bf16.msra.mxu0 0
    %244 = vmatprep.subr.bf16.mxu0 0
    %245 = vmatpush2.bf16.msra.mxu0 0
    %246 = vmatprep.subr.bf16.mxu0 0
    %247 = vmatpush2.bf16.msra.mxu0 0
    %248 = vmatprep.subr.bf16.mxu0 0
    %249 = vmatpush2.bf16.msra.mxu0 0
    %250 = vmatprep.subr.bf16.mxu0 0
    %251 = vmatpush2.bf16.msra.mxu0 0
    %252 = vmatprep.subr.bf16.mxu0 0
    %253 = vmatpush2.bf16.msra.mxu0 0
    %254 = vmatprep.subr.bf16.mxu0 0
    %255 = vmatpush2.bf16.msra.mxu0 0
    %256 = vmatprep.mubr.bf16.mxu0 0
    %257 = vmatmul.mubr.bf16.gmra.mxu0 %v160
    %v258 = vpop.f32.mrf.mxu0
    %v259 = vadd.f32 0.0, %v258
    %v260 = vpop.f32.mrf.mxu0
    %v261 = vpop.f32.mrf.mxu0
    %v262 = vadd.f32 0.0, %v261
    %v263 = vpop.f32.mrf.mxu0
    %264 = vmatprep.mubr.bf16.mxu0 0
    %265 = vmatmul.mubr.bf16.gmra.mxu0 %v161
    %v266 = vpop.f32.mrf.mxu0
    %v267 = vadd.f32 0.0, %v266
    %v268 = vpop.f32.mrf.mxu0
    %v269 = vpop.f32.mrf.mxu0
    %v270 = vadd.f32 0.0, %v269
    %v271 = vpop.f32.mrf.mxu0
    %272 = vmatprep.mubr.bf16.mxu0 0
    %273 = vmatmul.mubr.bf16.gmra.mxu0 %v162
    %v274 = vpop.f32.mrf.mxu0
    %v275 = vadd.f32 0.0, %v274
    %v276 = vpop.f32.mrf.mxu0
    %v277 = vpop.f32.mrf.mxu0
    %v278 = vadd.f32 0.0, %v277
    %v279 = vpop.f32.mrf.mxu0
    %280 = vmatprep.mubr.bf16.mxu0 0
    %281 = vmatmul.mubr.bf16.gmra.mxu0 %v163
    %v282 = vpop.f32.mrf.mxu0
    %v283 = vadd.f32 0.0, %v282
    %v284 = vpop.f32.mrf.mxu0
    %v285 = vpop.f32.mrf.mxu0
    %v286 = vadd.f32 0.0, %v285
    %v287 = vpop.f32.mrf.mxu0
    %288 = vmatprep.mubr.bf16.mxu0 0
    %289 = vmatmul.mubr.bf16.gmra.mxu0 %v164
    %v290 = vpop.f32.mrf.mxu0
    %v291 = vadd.f32 0.0, %v290
    %v292 = vpop.f32.mrf.mxu0
    %v293 = vpop.f32.mrf.mxu0
    %v294 = vadd.f32 0.0, %v293
    %v295 = vpop.f32.mrf.mxu0
    %296 = vmatprep.mubr.bf16.mxu0 0
    %297 = vmatmul.mubr.bf16.gmra.mxu0 %v165
    %v298 = vpop.f32.mrf.mxu0
    %v299 = vadd.f32 0.0, %v298
    %v300 = vpop.f32.mrf.mxu0
    %v301 = vpop.f32.mrf.mxu0
    %v302 = vadd.f32 0.0, %v301
    %v303 = vpop.f32.mrf.mxu0
    %304 = vmatprep.mubr.bf16.mxu0 0
    %305 = vmatmul.mubr.bf16.gmra.mxu0 %v166
    %v306 = vpop.f32.mrf.mxu0
    %v307 = vadd.f32 0.0, %v306
    %v308 = vpop.f32.mrf.mxu0
    %v309 = vpop.f32.mrf.mxu0
    %v310 = vadd.f32 0.0, %v309
    %v311 = vpop.f32.mrf.mxu0
    %312 = vmatprep.mubr.bf16.mxu0 0
    %313 = vmatmul.mubr.bf16.gmra.mxu0 %v167
    %v314 = vpop.f32.mrf.mxu0
    %v315 = vadd.f32 0.0, %v314
    %v316 = vpop.f32.mrf.mxu0
    %v317 = vpop.f32.mrf.mxu0
    %v318 = vadd.f32 0.0, %v317
    %v319 = vpop.f32.mrf.mxu0
    %320 = vdwg.mxu0
    %v321 = vadd.f32 %v80, %v259
    %v322 = vadd.f32 %v81, %v262
    %v323 = vadd.f32 %v82, %v267
    %v324 = vadd.f32 %v83, %v270
    %v325 = vadd.f32 %v84, %v275
    %v326 = vadd.f32 %v85, %v278
    %v327 = vadd.f32 %v86, %v283
    %v328 = vadd.f32 %v87, %v286
    %v329 = vadd.f32 %v88, %v291
    %v330 = vadd.f32 %v89, %v294
    %v331 = vadd.f32 %v90, %v299
    %v332 = vadd.f32 %v91, %v302
    %v333 = vadd.f32 %v92, %v307
    %v334 = vadd.f32 %v93, %v310
    %v335 = vadd.f32 %v94, %v315
    %v336 = vadd.f32 %v95, %v318
    %337 = vst [vmem:[#allocation2] sm:$0xff] %v321
    %338 = vst [vmem:[#allocation2 + $0x8] sm:$0xff] %v322
    %339 = vst [vmem:[#allocation2 + $0x10] sm:$0xff] %v323
    %340 = vst [vmem:[#allocation2 + $0x18] sm:$0xff] %v324
    %341 = vst [vmem:[#allocation2 + $0x20] sm:$0xff] %v325
    %342 = vst [vmem:[#allocation2 + $0x28] sm:$0xff] %v326
    %343 = vst [vmem:[#allocation2 + $0x30] sm:$0xff] %v327
    %344 = vst [vmem:[#allocation2 + $0x38] sm:$0xff] %v328
    %345 = vst [vmem:[#allocation2 + $0x40] sm:$0xff] %v329
    %346 = vst [vmem:[#allocation2 + $0x48] sm:$0xff] %v330
    %347 = vst [vmem:[#allocation2 + $0x50] sm:$0xff] %v331
    %348 = vst [vmem:[#allocation2 + $0x58] sm:$0xff] %v332
    %349 = vst [vmem:[#allocation2 + $0x60] sm:$0xff] %v333
    %350 = vst [vmem:[#allocation2 + $0x68] sm:$0xff] %v334
    %351 = vst [vmem:[#allocation2 + $0x70] sm:$0xff] %v335
    %352 = vst [vmem:[#allocation2 + $0x78] sm:$0xff] %v336
    // Predicated region
    $region30: #{tpu_custom_call.1} parent=1 // pred_check
      %p353 = pneg %p60
    $region31: #{tpu_custom_call.1} parent=1 // pred_check_branch
      %355 = sbr.rel (%p353) target = $region33
    $region32: #{tpu_custom_call.1} parent=1 // pred_region
      %v356 = vld [vmem:[#allocation2] sm:$0xff]
      %v357 = vld [vmem:[#allocation2 + $0x8] sm:$0xff]
      %v358 = vld [vmem:[#allocation2 + $0x10] sm:$0xff]
      %v359 = vld [vmem:[#allocation2 + $0x18] sm:$0xff]
      %v360 = vld [vmem:[#allocation2 + $0x20] sm:$0xff]
      %v361 = vld [vmem:[#allocation2 + $0x28] sm:$0xff]
      %v362 = vld [vmem:[#allocation2 + $0x30] sm:$0xff]
      %v363 = vld [vmem:[#allocation2 + $0x38] sm:$0xff]
      %v364 = vld [vmem:[#allocation2 + $0x40] sm:$0xff]
      %v365 = vld [vmem:[#allocation2 + $0x48] sm:$0xff]
      %v366 = vld [vmem:[#allocation2 + $0x50] sm:$0xff]
      %v367 = vld [vmem:[#allocation2 + $0x58] sm:$0xff]
      %v368 = vld [vmem:[#allocation2 + $0x60] sm:$0xff]
      %v369 = vld [vmem:[#allocation2 + $0x68] sm:$0xff]
      %v370 = vld [vmem:[#allocation2 + $0x70] sm:$0xff]
      %v371 = vld [vmem:[#allocation2 + $0x78] sm:$0xff]
      %v372 = vld [vmem:[#allocation8] sm:$0xff]
      %v373 = vld [vmem:[#allocation8 + $0x8] sm:$0xff]
      %v374 = vld [vmem:[#allocation8 + $0x10] sm:$0xff]
      %v375 = vld [vmem:[#allocation8 + $0x18] sm:$0xff]
      %v376 = vld [vmem:[#allocation8 + $0x20] sm:$0xff]
      %v377 = vld [vmem:[#allocation8 + $0x28] sm:$0xff]
      %v378 = vld [vmem:[#allocation8 + $0x30] sm:$0xff]
      %v379 = vld [vmem:[#allocation8 + $0x38] sm:$0xff]
      %v380 = vld [vmem:[#allocation8 + $0x40] sm:$0xff]
      %v381 = vld [vmem:[#allocation8 + $0x48] sm:$0xff]
      %v382 = vld [vmem:[#allocation8 + $0x50] sm:$0xff]
      %v383 = vld [vmem:[#allocation8 + $0x58] sm:$0xff]
      %v384 = vld [vmem:[#allocation8 + $0x60] sm:$0xff]
      %v385 = vld [vmem:[#allocation8 + $0x68] sm:$0xff]
      %v386 = vld [vmem:[#allocation8 + $0x70] sm:$0xff]
      %v387 = vld [vmem:[#allocation8 + $0x78] sm:$0xff]
      %v388 = vsub.f32 %v356, %v372
      %v389 = vsub.f32 %v357, %v373
      %v390 = vsub.f32 %v358, %v374
      %v391 = vsub.f32 %v359, %v375
      %v392 = vsub.f32 %v360, %v376
      %v393 = vsub.f32 %v361, %v377
      %v394 = vsub.f32 %v362, %v378
      %v395 = vsub.f32 %v363, %v379
      %v396 = vsub.f32 %v364, %v380
      %v397 = vsub.f32 %v365, %v381
      %v398 = vsub.f32 %v366, %v382
      %v399 = vsub.f32 %v367, %v383
      %v400 = vsub.f32 %v368, %v384
      %v401 = vsub.f32 %v369, %v385
      %v402 = vsub.f32 %v370, %v386
      %v403 = vsub.f32 %v371, %v387
      %404 = vst [vmem:[#allocation9] sm:$0xff] %v388
      %405 = vst [vmem:[#allocation9 + $0x8] sm:$0xff] %v389
      %406 = vst [vmem:[#allocation9 + $0x10] sm:$0xff] %v390
      %407 = vst [vmem:[#allocation9 + $0x18] sm:$0xff] %v391
      %408 = vst [vmem:[#allocation9 + $0x20] sm:$0xff] %v392
      %409 = vst [vmem:[#allocation9 + $0x28] sm:$0xff] %v393
      %410 = vst [vmem:[#allocation9 + $0x30] sm:$0xff] %v394
      %411 = vst [vmem:[#allocation9 + $0x38] sm:$0xff] %v395
      %412 = vst [vmem:[#allocation9 + $0x40] sm:$0xff] %v396
      %413 = vst [vmem:[#allocation9 + $0x48] sm:$0xff] %v397
      %414 = vst [vmem:[#allocation9 + $0x50] sm:$0xff] %v398
      %415 = vst [vmem:[#allocation9 + $0x58] sm:$0xff] %v399
      %416 = vst [vmem:[#allocation9 + $0x60] sm:$0xff] %v400
      %417 = vst [vmem:[#allocation9 + $0x68] sm:$0xff] %v401
      %418 = vst [vmem:[#allocation9 + $0x70] sm:$0xff] %v402
      %419 = vst [vmem:[#allocation9 + $0x78] sm:$0xff] %v403
      %v420 = vld [vmem:[#allocation8] sm:$0xff]
      %v421 = vld [vmem:[#allocation8 + $0x8] sm:$0xff]
      %v422 = vld [vmem:[#allocation8 + $0x10] sm:$0xff]
      %v423 = vld [vmem:[#allocation8 + $0x18] sm:$0xff]
      %v424 = vld [vmem:[#allocation8 + $0x20] sm:$0xff]
      %v425 = vld [vmem:[#allocation8 + $0x28] sm:$0xff]
      %v426 = vld [vmem:[#allocation8 + $0x30] sm:$0xff]
      %v427 = vld [vmem:[#allocation8 + $0x38] sm:$0xff]
      %v428 = vld [vmem:[#allocation8 + $0x40] sm:$0xff]
      %v429 = vld [vmem:[#allocation8 + $0x48] sm:$0xff]
      %v430 = vld [vmem:[#allocation8 + $0x50] sm:$0xff]
      %v431 = vld [vmem:[#allocation8 + $0x58] sm:$0xff]
      %v432 = vld [vmem:[#allocation8 + $0x60] sm:$0xff]
      %v433 = vld [vmem:[#allocation8 + $0x68] sm:$0xff]
      %v434 = vld [vmem:[#allocation8 + $0x70] sm:$0xff]
      %v435 = vld [vmem:[#allocation8 + $0x78] sm:$0xff]
      %v436 = vadd.f32 %v420, %v388
      %v437 = vadd.f32 %v421, %v389
      %v438 = vadd.f32 %v422, %v390
      %v439 = vadd.f32 %v423, %v391
      %v440 = vadd.f32 %v424, %v392
      %v441 = vadd.f32 %v425, %v393
      %v442 = vadd.f32 %v426, %v394
      %v443 = vadd.f32 %v427, %v395
      %v444 = vadd.f32 %v428, %v396
      %v445 = vadd.f32 %v429, %v397
      %v446 = vadd.f32 %v430, %v398
      %v447 = vadd.f32 %v431, %v399
      %v448 = vadd.f32 %v432, %v400
      %v449 = vadd.f32 %v433, %v401
      %v450 = vadd.f32 %v434, %v402
      %v451 = vadd.f32 %v435, %v403
      %452 = vst [vmem:[#allocation10] sm:$0xff] %v436
      %453 = vst [vmem:[#allocation10 + $0x8] sm:$0xff] %v437
      %454 = vst [vmem:[#allocation10 + $0x10] sm:$0xff] %v438
      %455 = vst [vmem:[#allocation10 + $0x18] sm:$0xff] %v439
      %456 = vst [vmem:[#allocation10 + $0x20] sm:$0xff] %v440
      %457 = vst [vmem:[#allocation10 + $0x28] sm:$0xff] %v441
      %458 = vst [vmem:[#allocation10 + $0x30] sm:$0xff] %v442
      %459 = vst [vmem:[#allocation10 + $0x38] sm:$0xff] %v443
      %460 = vst [vmem:[#allocation10 + $0x40] sm:$0xff] %v444
      %461 = vst [vmem:[#allocation10 + $0x48] sm:$0xff] %v445
      %462 = vst [vmem:[#allocation10 + $0x50] sm:$0xff] %v446
      %463 = vst [vmem:[#allocation10 + $0x58] sm:$0xff] %v447
      %464 = vst [vmem:[#allocation10 + $0x60] sm:$0xff] %v448
      %465 = vst [vmem:[#allocation10 + $0x68] sm:$0xff] %v449
      %466 = vst [vmem:[#allocation10 + $0x70] sm:$0xff] %v450
      %467 = vst [vmem:[#allocation10 + $0x78] sm:$0xff] %v451
    $region33: #{tpu_custom_call.1} parent=1 // pred_fallthru
      _
    // Predicated region
    $region34: #{tpu_custom_call.1} parent=1 // pred_check
      _
    $region35: #{tpu_custom_call.1} parent=1 // pred_check_branch
      %469 = sbr.rel (0) target = $region37
    $region36: #{tpu_custom_call.1} parent=1 // pred_region
      %s471 = ssub.s32 2048, 2048
      %472 = vsyncadd [#allocation5], %s471
      %s473 = sshll.u32 [#allocation9], 4
      %s474 = int_to_ptr.vmem [resolvable:$true] %s473
      %479 = dma.vmem_to_hbm [thread:$0]  %s474, 2048, %s3, [#allocation5], 128, 128, 8
    $region37: #{tpu_custom_call.1} parent=1 // pred_fallthru
      _
    // Predicated region
    $region38: #{tpu_custom_call.1} parent=1 // pred_check
      _
    $region39: #{tpu_custom_call.1} parent=1 // pred_check_branch
      %481 = sbr.rel (0) target = $region41
    $region40: #{tpu_custom_call.1} parent=1 // pred_region
      %s483 = ssub.s32 2048, 2048
      %484 = vsyncadd [#allocation11], %s483
      %s485 = sshll.u32 [#allocation10], 4
      %s486 = int_to_ptr.vmem [resolvable:$true] %s485
      %491 = dma.vmem_to_hbm [thread:$0]  %s486, 2048, %s4, [#allocation11], 128, 128, 8
    $region41: #{tpu_custom_call.1} parent=1 // pred_fallthru
      _
    // Predicated region
    $region42: #{tpu_custom_call.1} parent=1 // pred_check
      _
    $region43: #{tpu_custom_call.1} parent=1 // pred_check_branch
      %493 = sbr.rel (0) target = $region45
    $region44: #{tpu_custom_call.1} parent=1 // pred_region
      %494 = dma.done [#allocation5], 2048
    $region45: #{tpu_custom_call.1} parent=1 // pred_fallthru
      _
    // Predicated region
    $region46: #{tpu_custom_call.1} parent=1 // pred_check
      _
    $region47: #{tpu_custom_call.1} parent=1 // pred_check_branch
      %496 = sbr.rel (0) target = $region49
    $region48: #{tpu_custom_call.1} parent=1 // pred_region
      %497 = dma.done [#allocation11], 2048
    $region49: #{tpu_custom_call.1} parent=1 // pred_fallthru
      _
    %498 = vsyncpa [#allocation4], 1
    %499 = vsyncpa [#allocation7], 1
    %500 = vsyncpa [#allocation5], 1
    %501 = vsyncpa [#allocation11], 1

</llo_original>
